<compile_context>
chip_gen: v7x
topology: tpu7x:2x2x1
jax: 0.10.0
libtpu: 0.0.40
codegen_flags: <defaults>
</compile_context>

<pallas_src>
import functools
import numpy as np
import jax
import jax.numpy as jnp
from jax import lax
from jax.experimental import pallas as pl
from jax.experimental.pallas import tpu as pltpu

MID = 64            # self.mid_channels
NUM_BLOCKS = 30     # ResidualBlocksWithInputConv(3, 64, 30)
ITERS = 12          # self.iters
LRELU_SLOPE = 0.1
LANE = 128
TARGET_TILE_LANES = 2048   # review: 512-2048 lanes per tile, multiple of 128


def _round_up(x, m):
    return (x + m - 1) // m * m


# ----------------------------------------------------------------------------
# pltpu.roll shift-direction probe (run once, eagerly).  Guarantees the in-kernel
# left-shift used for the kw taps is correct regardless of the roll convention.
# ----------------------------------------------------------------------------
def _roll_probe_kernel(x_ref, o_ref):
    o_ref[...] = pltpu.roll(x_ref[...], 1, 1)


@functools.lru_cache(maxsize=None)
def _roll_is_numpy_convention():
    """True iff pltpu.roll matches np.roll (positive shift moves data to higher idx)."""
    x = jnp.broadcast_to(jnp.arange(LANE, dtype=jnp.float32), (8, LANE))
    y = pl.pallas_call(
        _roll_probe_kernel,
        out_shape=jax.ShapeDtypeStruct((8, LANE), jnp.float32),
    )(x)
    return bool(np.asarray(y)[0, 1] == 0.0)


def _left_shift_amounts(tile):
    """Static roll amounts shifting the lane axis LEFT by 1 and 2 elements."""
    if _roll_is_numpy_convention():
        return (tile - 1, tile - 2)
    return (1, 2)


# ----------------------------------------------------------------------------
# Pallas conv kernel body:
#   acc = sum_kw  W_kw (Cout_p, 3*Cin) @ left_shift_kw(x) (3*Cin, TILE)
#   acc += bias; activation; optional residual add;  store f32.
# x is the bf16 row-tap-stacked slab with the padded flattened spatial axis on lanes.
# ----------------------------------------------------------------------------
def _conv_kernel(w_ref, b_ref, x_ref, *rest, shifts, act, has_residual):
    if has_residual:
        r_ref, o_ref = rest
    else:
        (o_ref,) = rest
        r_ref = None
    x = x_ref[0]                                                  # (K3p, TILE) bf16
    acc = jnp.dot(w_ref[0], x, preferred_element_type=jnp.float32)
    acc = acc + jnp.dot(w_ref[1], pltpu.roll(x, shifts[0], 1),
                        preferred_element_type=jnp.float32)
    acc = acc + jnp.dot(w_ref[2], pltpu.roll(x, shifts[1], 1),
                        preferred_element_type=jnp.float32)
    acc = acc + b_ref[...]                                        # (Cout_p, 1) broadcast
    if act == "relu":
        acc = jnp.maximum(acc, 0.0)
    elif act == "lrelu":
        acc = jnp.where(acc >= 0.0, acc, LRELU_SLOPE * acc)
    if has_residual:
        acc = acc + r_ref[0]
    o_ref[0] = acc


def conv3x3(x, w, b, act="none", residual=None, target_lanes=TARGET_TILE_LANES):
    """3x3 conv, stride 1, pad 1 (PyTorch nn.Conv2d semantics), NCHW, f32 in/out.

    Lowered to a single Pallas kernel: bf16 MXU matmuls (f32 accumulation) over a
    row-tap-stacked slab; bias, activation and an optional residual add are fused.
    """
    N, Cin, H, W = x.shape
    Cout = w.shape[0]
    Cout_p = _round_up(Cout, 8)            # pad tiny Cout (3 -> 8)
    K3 = 3 * Cin
    K3p = _round_up(K3, 16)                # bf16 sublane packing

    Wp = _round_up(W + 2, LANE)            # padded row width (lane axis), >= W + 2
    TR = max(1, min(H, target_lanes // Wp))  # whole rows per spatial tile
    Hp = _round_up(H, TR)
    n_tiles = Hp // TR
    TILE = TR * Wp                         # multiple of 128 (lane-dense stores)
    Lp = Hp * Wp

    # ---- host prep: zero-pad + 3x row-tap (kh) stack, cast to bf16 ----------
    # xp[n, c, h', w'] = x[n, c, h'-1, w'-1] (zeros outside); row width padded to Wp.
    xp = jnp.pad(x, ((0, 0), (0, 0), (1, Hp + 1 - H), (1, Wp - 1 - W)))
    x3 = jnp.concatenate([xp[:, :, kh:kh + Hp, :] for kh in range(3)], axis=1)
    x3 = jnp.pad(x3, ((0, 0), (0, K3p - K3), (0, 0), (0, 0)))
    x3 = x3.reshape(N, K3p, Lp).astype(jnp.bfloat16)

    # ---- weights: one (Cout_p, 3*Cin) slab per column tap kw -----------------
    wk = jnp.stack(
        [jnp.transpose(w[:, :, :, kw], (0, 2, 1)).reshape(Cout, K3) for kw in range(3)],
        axis=0)
    wk = jnp.pad(wk, ((0, 0), (0, Cout_p - Cout), (0, K3p - K3))).astype(jnp.bfloat16)
    bk = jnp.pad(b, (0, Cout_p - Cout)).reshape(Cout_p, 1).astype(jnp.float32)

    in_specs = [
        pl.BlockSpec((3, Cout_p, K3p), lambda i, j: (0, 0, 0)),
        pl.BlockSpec((Cout_p, 1), lambda i, j: (0, 0)),
        pl.BlockSpec((1, K3p, TILE), lambda i, j: (i, 0, j)),
    ]
    args = [wk, bk, x3]
    has_residual = residual is not None
    if has_residual:
        r = jnp.pad(residual, ((0, 0), (0, Cout_p - Cout), (0, Hp - H), (0, Wp - W)))
        r = r.reshape(N, Cout_p, Lp).astype(jnp.float32)
        in_specs.append(pl.BlockSpec((1, Cout_p, TILE), lambda i, j: (i, 0, j)))
        args.append(r)

    out_bytes = N * Cout_p * Lp * 4
    bytes_accessed = (x3.size * 2 + wk.size * 2 + bk.size * 4 + out_bytes
                      + (args[-1].size * 4 if has_residual else 0))
    flops = 2 * 3 * N * Cout_p * K3p * Lp

    kernel = functools.partial(
        _conv_kernel, shifts=_left_shift_amounts(TILE), act=act,
        has_residual=has_residual)

    out = pl.pallas_call(
        kernel,
        out_shape=jax.ShapeDtypeStruct((N, Cout_p, Lp), jnp.float32),
        grid=(N, n_tiles),
        in_specs=in_specs,
        out_specs=pl.BlockSpec((1, Cout_p, TILE), lambda i, j: (i, 0, j)),
        compiler_params=pltpu.CompilerParams(
            dimension_semantics=("parallel", "parallel"),
            vmem_limit_bytes=32 * 1024 * 1024),
        cost_estimate=pl.CostEstimate(
            flops=int(flops), transcendentals=0, bytes_accessed=int(bytes_accessed)),
    )(*args)

    out = out.reshape(N, Cout_p, Hp, Wp)[:, :Cout, :H, :W]
    return out


def conv3x3_reference(x, w, b, act="none", residual=None):
    """Pure-JAX reference (bf16-quantized inputs, f32 math) for self-checking."""
    xb = x.astype(jnp.bfloat16).astype(jnp.float32)
    wb = w.astype(jnp.bfloat16).astype(jnp.float32)
    out = lax.conv_general_dilated(
        xb, wb, window_strides=(1, 1), padding=((1, 1), (1, 1)),
        dimension_numbers=("NCHW", "OIHW", "NCHW"),
        precision=lax.Precision.HIGHEST)
    out = out + b.reshape(1, -1, 1, 1)
    if act == "relu":
        out = jnp.maximum(out, 0.0)
    elif act == "lrelu":
        out = jnp.where(out >= 0.0, out, LRELU_SLOPE * out)
    if residual is not None:
        out = out + residual
    return out


# ----------------------------------------------------------------------------
# Glue ops (plain JAX)
# ----------------------------------------------------------------------------
def pixel_shuffle(x, r):
    N, Crr, H, W = x.shape
    C = Crr // (r * r)
    x = x.reshape(N, C, r, r, H, W)
    x = jnp.transpose(x, (0, 1, 4, 2, 5, 3))
    return x.reshape(N, C, H * r, W * r)


def _upsample_matrix(in_size, scale):
    # matches nn.Upsample(mode='bilinear', align_corners=False)
    out_size = in_size * scale
    dst = np.arange(out_size, dtype=np.float64)
    src = np.maximum((dst + 0.5) / scale - 0.5, 0.0)
    i0 = np.minimum(np.floor(src).astype(np.int64), in_size - 1)
    frac = src - i0
    i1 = np.minimum(i0 + 1, in_size - 1)
    M = np.zeros((out_size, in_size), dtype=np.float32)
    M[np.arange(out_size), i0] += (1.0 - frac)
    M[np.arange(out_size), i1] += frac
    return jnp.asarray(M)


def bilinear_upsample(x, scale):
    N, C, H, W = x.shape
    Mh = _upsample_matrix(H, scale)
    Mw = _upsample_matrix(W, scale)
    return jnp.einsum("oh,nchw,pw->ncop", Mh, x, Mw)


def flow_warp(x, flow):
    """mmedit flow_warp: bilinear grid_sample, padding_mode='zeros', align_corners=True.
    x: (N,C,H,W), flow: (N,H,W,2) with flow[...,0]=dx, flow[...,1]=dy.
    Only used when real (RAFT) flows are supplied.
    # TODO(synk): if real flows are plugged in, replace the XLA gather below with a
    # Pallas DMA-gather kernel (take_along_axis gathers serialize on TPU)."""
    N, C, H, W = x.shape
    gy, gx = jnp.meshgrid(jnp.arange(H, dtype=jnp.float32),
                          jnp.arange(W, dtype=jnp.float32), indexing="ij")
    sx = gx[None] + flow[..., 0]
    sy = gy[None] + flow[..., 1]
    x0 = jnp.floor(sx)
    y0 = jnp.floor(sy)
    x1 = x0 + 1.0
    y1 = y0 + 1.0
    wx1 = sx - x0
    wx0 = 1.0 - wx1
    wy1 = sy - y0
    wy0 = 1.0 - wy1
    xflat = x.reshape(N, C, H * W)

    def sample(yi, xi):
        valid = ((xi >= 0) & (xi <= W - 1) & (yi >= 0) & (yi <= H - 1)).astype(x.dtype)
        xc = jnp.clip(xi, 0, W - 1).astype(jnp.int32)
        yc = jnp.clip(yi, 0, H - 1).astype(jnp.int32)
        idx = jnp.broadcast_to((yc * W + xc).reshape(N, 1, H * W), (N, C, H * W))
        g = jnp.take_along_axis(xflat, idx, axis=2).reshape(N, C, H, W)
        return g * valid[:, None]

    return (sample(y0, x0) * (wy0 * wx0)[:, None]
            + sample(y0, x1) * (wy0 * wx1)[:, None]
            + sample(y1, x0) * (wy1 * wx0)[:, None]
            + sample(y1, x1) * (wy1 * wx1)[:, None])


# ----------------------------------------------------------------------------
# Sub-modules
# ----------------------------------------------------------------------------
def feature_extractor(p, x):
    # ResidualBlocksWithInputConv(3, 64, 30): conv -> lrelu -> 30x ResidualBlockNoBN
    x = conv3x3(x, p["in_w"], p["in_b"], "lrelu")

    def block(h, bp):
        w1, b1, w2, b2 = bp
        y = conv3x3(h, w1, b1, "relu")
        # conv2 + residual add fused into one kernel (review: residual variant).
        return conv3x3(y, w2, b2, "none", residual=h), None

    x, _ = lax.scan(block, x, (p["blk_w1"], p["blk_b1"], p["blk_w2"], p["blk_b2"]))
    return x


def reconstruct(x, rp):
    # PixelShufflePack(64,64,2) lrelu PixelShufflePack(64,64,2) lrelu conv lrelu conv(64->3)
    # (LeakyReLU commutes with the pixel-shuffle permutation, so it is fused into the convs.)
    y = conv3x3(x, rp["psp1_w"], rp["psp1_b"], "lrelu")
    y = pixel_shuffle(y, 2)
    y = conv3x3(y, rp["psp2_w"], rp["psp2_b"], "lrelu")
    y = pixel_shuffle(y, 2)
    y = conv3x3(y, rp["c3_w"], rp["c3_b"], "lrelu")
    y = conv3x3(y, rp["c4_w"], rp["c4_b"], "none")
    return y


# ----------------------------------------------------------------------------
# Full RVSR forward
# ----------------------------------------------------------------------------
def rvsr_forward(params, input_frames, iters=ITERS,
                 flow_forward=None, flow_backward=None):
    x = input_frames * 2.0 - 1.0
    n, t, c, h, w = x.shape

    # feature grid level 0: all t frames batched through the extractor in one call.
    fg0_all = feature_extractor(params["feat"], x.reshape(n * t, c, h, w))
    fg0_all = fg0_all.reshape(n, t, MID, h, w)
    fg0 = [fg0_all[:, i] for i in range(t)]

    # TODO(synk): RAFT is an external pretrained optical-flow network loaded from a
    # checkpoint (plus an 8x bilinear upsample that only feeds it); it has no in-script
    # equivalent.  With the zero-flow placeholders every flow_warp is an exact identity,
    # so the warp is skipped entirely unless real flows are passed in.
    have_flows = (flow_forward is not None) and (flow_backward is not None)

    output_predictions = [[] for _ in range(iters * 2 + 1)]

    x01 = (x + 1.0) / 2.0
    base = bilinear_upsample(x01.reshape(n * t, c, h, w), 4).reshape(n, t, c, 4 * h, 4 * w)

    fg1, fg2 = [], []

    # ---------------- backward propagation ----------------
    feat_prop = jnp.zeros((n, MID, h, w), jnp.float32)
    for i in range(t - 1, -1, -1):
        if i == t - 1:
            fg1.append(fg0[t - 1])
            feat_prop = fg0[t - 1]
            for itr in range(iters):
                output_predictions[itr].append(None)
        else:
            merged = fg0[i]
            base_i = base[:, i]
            xs = params["per_iter"]
            if have_flows:
                xs = (params["per_iter"], flow_backward[:, :, i])  # (iters, n, 2, h, w)

            def bwd_step(fp, step_xs, merged=merged, base_i=base_i):
                if have_flows:
                    ip, flow = step_xs
                    warp = flow_warp(fp, jnp.transpose(flow, (0, 2, 3, 1)))
                else:
                    ip = step_xs
                    warp = fp  # zero flow -> identity warp
                cat = jnp.concatenate([merged, warp], axis=1)
                hid = conv3x3(cat, ip["fus_w1"], ip["fus_b1"], "lrelu")
                hr = conv3x3(hid, ip["fus_w2"], ip["fus_b2"], "none")
                out = reconstruct(hr + merged, ip) + base_i
                return hr, (hr, out)

            feat_prop, (hr_stack, out_stack) = lax.scan(bwd_step, feat_prop, xs)
            for itr in range(iters):
                fg1.append(hr_stack[itr])
                output_predictions[itr].append(out_stack[itr])

    for itr in range(iters):
        output_predictions[itr] = output_predictions[itr][::-1]
    fg1 = fg1[::-1]

    # ---------------- forward propagation + final reconstruction ----------------
    feat_prop = jnp.zeros((n, MID, h, w), jnp.float32)
    for i in range(t):
        if i == 0:
            fg2.append(fg0[0])
            feat_prop = fg0[0]
            for itr in range(iters):
                output_predictions[iters + itr].append(None)
        else:
            merged = fg0[i]
            base_i = base[:, i]
            xs = params["per_iter"]
            if have_flows:
                xs = (params["per_iter"], flow_forward[:, :, i - 1])

            def fwd_step(fp, step_xs, merged=merged, base_i=base_i):
                if have_flows:
                    ip, flow = step_xs
                    warp = flow_warp(fp, jnp.transpose(flow, (0, 2, 3, 1)))
                else:
                    ip = step_xs
                    warp = fp  # zero flow -> identity warp
                cat = jnp.concatenate([merged, warp], axis=1)
                hid = conv3x3(cat, ip["fus_w1"], ip["fus_b1"], "lrelu")
                # second fusion conv with the "+ merged" residual fused in.
                fp_new = conv3x3(hid, ip["fus_w2"], ip["fus_b2"], "none", residual=merged)
                out = reconstruct(fp_new, ip) + base_i
                return fp_new, (fp_new, out)

            feat_prop, (fp_stack, out_stack) = lax.scan(fwd_step, feat_prop, xs)
            for itr in range(iters):
                fg2.append(fp_stack[itr])
                output_predictions[iters + itr].append(out_stack[itr])

        # final branch: fusion(192->64) lrelu, conv, lrelu, PSP, lrelu, PSP, lrelu, conv_hr, conv_last
        o = jnp.concatenate([fg0[i], fg1[i], fg2[i]], axis=1)
        o = conv3x3(o, params["fusion"]["w1"], params["fusion"]["b1"], "lrelu")
        o = conv3x3(o, params["fusion"]["w2"], params["fusion"]["b2"], "lrelu")  # + self.lrelu
        o = conv3x3(o, params["up1_w"], params["up1_b"], "lrelu")
        o = pixel_shuffle(o, 2)
        o = conv3x3(o, params["up2_w"], params["up2_b"], "lrelu")
        o = pixel_shuffle(o, 2)
        o = conv3x3(o, params["conv_hr_w"], params["conv_hr_b"], "lrelu")
        o = conv3x3(o, params["conv_last_w"], params["conv_last_b"], "none")
        o = o + base[:, i]
        output_predictions[2 * iters].append(o)

    return output_predictions


# ----------------------------------------------------------------------------
# Deterministic parameter init (same shapes as the PyTorch module)
# ----------------------------------------------------------------------------
def _w(key, shape, cin):
    return jax.random.normal(key, shape, jnp.float32) * (0.1 / float(np.sqrt(cin * 9)))


def init_params(key):
    k = jax.random.split(key, 16)
    p = {}
    p["feat"] = {
        "in_w": _w(k[0], (MID, 3, 3, 3), 3),
        "in_b": jnp.zeros((MID,), jnp.float32),
        "blk_w1": _w(k[1], (NUM_BLOCKS, MID, MID, 3, 3), MID),
        "blk_b1": jnp.zeros((NUM_BLOCKS, MID), jnp.float32),
        "blk_w2": _w(k[2], (NUM_BLOCKS, MID, MID, 3, 3), MID),
        "blk_b2": jnp.zeros((NUM_BLOCKS, MID), jnp.float32),
    }
    p["per_iter"] = {
        "fus_w1": _w(k[3], (ITERS, MID, 2 * MID, 3, 3), 2 * MID),
        "fus_b1": jnp.zeros((ITERS, MID), jnp.float32),
        "fus_w2": _w(k[4], (ITERS, MID, MID, 3, 3), MID),
        "fus_b2": jnp.zeros((ITERS, MID), jnp.float32),
        "psp1_w": _w(k[5], (ITERS, 4 * MID, MID, 3, 3), MID),
        "psp1_b": jnp.zeros((ITERS, 4 * MID), jnp.float32),
        "psp2_w": _w(k[6], (ITERS, 4 * MID, MID, 3, 3), MID),
        "psp2_b": jnp.zeros((ITERS, 4 * MID), jnp.float32),
        "c3_w": _w(k[7], (ITERS, MID, MID, 3, 3), MID),
        "c3_b": jnp.zeros((ITERS, MID), jnp.float32),
        "c4_w": _w(k[8], (ITERS, 3, MID, 3, 3), MID),
        "c4_b": jnp.zeros((ITERS, 3), jnp.float32),
    }
    p["fusion"] = {
        "w1": _w(k[9], (MID, 3 * MID, 3, 3), 3 * MID),
        "b1": jnp.zeros((MID,), jnp.float32),
        "w2": _w(k[10], (MID, MID, 3, 3), MID),
        "b2": jnp.zeros((MID,), jnp.float32),
    }
    p["up1_w"] = _w(k[11], (4 * MID, MID, 3, 3), MID)
    p["up1_b"] = jnp.zeros((4 * MID,), jnp.float32)
    p["up2_w"] = _w(k[12], (4 * 64, MID, 3, 3), MID)
    p["up2_b"] = jnp.zeros((4 * 64,), jnp.float32)
    p["conv_hr_w"] = _w(k[13], (64, 64, 3, 3), 64)
    p["conv_hr_b"] = jnp.zeros((64,), jnp.float32)
    p["conv_last_w"] = _w(k[14], (3, 64, 3, 3), 64)
    p["conv_last_b"] = jnp.zeros((3,), jnp.float32)
    return p


if __name__ == "__main__":
    key = jax.random.PRNGKey(0)
    pkey, xkey, ckey = jax.random.split(key, 3)

    # --- conv kernel self-check vs. pure-JAX reference (also warms the roll probe).
    # Odd Cin/Cout/H/W exercise the channel padding, row tiling and lane padding paths.
    k1, k2, k3, k4 = jax.random.split(ckey, 4)
    xt = jax.random.uniform(k1, (2, 5, 9, 11), jnp.float32)
    wt = jax.random.normal(k2, (7, 5, 3, 3), jnp.float32) * 0.1
    bt = jax.random.normal(k3, (7,), jnp.float32) * 0.1
    rt = jax.random.normal(k4, (2, 7, 9, 11), jnp.float32) * 0.1
    for act, res in (("none", None), ("relu", None), ("lrelu", rt)):
        got = conv3x3(xt, wt, bt, act, residual=res, target_lanes=256)
        want = conv3x3_reference(xt, wt, bt, act, residual=res)
        np.testing.assert_allclose(np.asarray(got), np.asarray(want),
                                   rtol=2e-2, atol=2e-3)

    params = init_params(pkey)
    n, t, c, h, w = 1, 2, 3, 8, 8
    input_frames = jax.random.uniform(xkey, (n, t, c, h, w), jnp.float32)

    fwd = jax.jit(functools.partial(rvsr_forward, iters=ITERS))
    preds = fwd(params, input_frames)

    leaves = jax.tree_util.tree_leaves(preds)
    jax.block_until_ready(leaves)

    # sanity: per-iteration and final-branch outputs are (n, 3, 4h, 4w)
    assert preds[0][0].shape == (n, 3, 4 * h, 4 * w)
    assert preds[2 * ITERS][0].shape == (n, 3, 4 * h, 4 * w)
    print("KERNEL_OK")
</pallas_src>

<mosaic_0001>
module attributes {stable_mosaic.version = 11 : i64} {
  func.func @_roll_probe_kernel(%arg0: memref<8x128xf32, #tpu.memory_space<vmem>>, %arg1: memref<8x128xf32, #tpu.memory_space<vmem>>) attributes {dimension_semantics = [], scalar_prefetch = 0 : i64, scratch_operands = 0 : i64, tpu.core_type = #tpu.core_type<tc>} {
    %c0 = arith.constant 0 : index
    %c0_0 = arith.constant 0 : index
    %0 = vector.load %arg0[%c0, %c0_0] : memref<8x128xf32, #tpu.memory_space<vmem>>, vector<8x128xf32>
    %c1_i32 = arith.constant 1 : i32
    %1 = tpu.dynamic_rotate %0 by %c1_i32 dim 1 : vector<8x128xf32>, i32 -> vector<8x128xf32>
    %c0_1 = arith.constant 0 : index
    %c0_2 = arith.constant 0 : index
    %2 = vector.load %arg1[%c0_1, %c0_2] : memref<8x128xf32, #tpu.memory_space<vmem>>, vector<8x128xf32>
    tpu.vector_store %arg1[%c0_1, %c0_2], %1 {strides = array<i32>} : memref<8x128xf32, #tpu.memory_space<vmem>>, vector<8x128xf32>,
    return
  }
}

</mosaic_0001>

<llo_original>
// kernel: tpu_custom_call.1
$region0: #{tpu_custom_call.1}
  #allocation0 [shape = 'u32[]', space=smem, size = 0x4, offset = 0x4, fixed_abs, tag = 'smem constant byte address 0x4 - core index']
  #allocation1 [shape = 'u32[144,128]{1,0:T(1,128)}', space=vmem, size = 0x12000, scoped, tag = 'internal scratch']
  %s0 = inlined_call_operand.hbm [shape: f32[8,128], index: 0, kind: input, shape index: {}]
  %s1 = inlined_call_operand.hbm [shape: f32[8,128], index: 1, kind: output, shape index: {}]
  %s2 = sld [smem:[#allocation0]]
  $region18: #{tpu_custom_call.1} parent=0
    _
  %s4 = ssub.s32 1, %s2
  %s5 = scalar_select 0, %s4, %s2
  $region1: #{tpu_custom_call.1} parent=0
    #allocation2 [shape = 'u8[4096]{0}', space=vmem, size = 0x1000, scoped, tag = 'input window, operand 0, single buffered']
    #allocation3 [shape = 's32[1]{0}', space=sflag, size = 0x4, scoped, tag = 'scoped memory for tpu_custom_call.1']
    #allocation4 [shape = 's32[1]{0}', space=sflag, size = 0x4, scoped, tag = 'scoped memory for tpu_custom_call.1']
    #allocation5 [shape = 'u8[4096]{0}', space=vmem, size = 0x1000, scoped, tag = 'output window, operand 0, single buffered']
    %6 = vsyncpa [#allocation3], 0
    %7 = vsyncpa [#allocation4], 0
    // Predicated region
    $region2: #{tpu_custom_call.1} parent=1 // pred_check
      _
    $region3: #{tpu_custom_call.1} parent=1 // pred_check_branch
      %9 = sbr.rel (0) target = $region5
    $region4: #{tpu_custom_call.1} parent=1 // pred_region
      %s11 = ssub.s32 128, 128
      %12 = vsyncadd [#allocation3], %s11
      %s14 = sshll.u32 [#allocation2], 4
      %s15 = int_to_ptr.vmem [resolvable:$true] %s14
      %17 = dma.hbm_to_vmem [thread:$0]  %s0, 128, %s15, [#allocation3]
    $region5: #{tpu_custom_call.1} parent=1 // pred_fallthru
      _
    // Predicated region
    $region6: #{tpu_custom_call.1} parent=1 // pred_check
      _
    $region7: #{tpu_custom_call.1} parent=1 // pred_check_branch
      %19 = sbr.rel (0) target = $region9
    $region8: #{tpu_custom_call.1} parent=1 // pred_region
      %20 = dma.done [#allocation3], 128
    $region9: #{tpu_custom_call.1} parent=1 // pred_fallthru
      _
    %v21 = vld [vmem:[#allocation2] sm:$0xff]
    %22 = vrot.lane.b32.xlu0 %v21, 1
    %v23 = vpop.permute.xlu0 %22
    %24 = vst [vmem:[#allocation5] sm:$0xff] %v23
    // Predicated region
    $region10: #{tpu_custom_call.1} parent=1 // pred_check
      _
    $region11: #{tpu_custom_call.1} parent=1 // pred_check_branch
      %26 = sbr.rel (0) target = $region13
    $region12: #{tpu_custom_call.1} parent=1 // pred_region
      %s28 = ssub.s32 128, 128
      %29 = vsyncadd [#allocation4], %s28
      %s31 = sshll.u32 [#allocation5], 4
      %s32 = int_to_ptr.vmem [resolvable:$true] %s31
      %34 = dma.vmem_to_hbm [thread:$0]  %s32, 128, %s1, [#allocation4]
    $region13: #{tpu_custom_call.1} parent=1 // pred_fallthru
      _
    // Predicated region
    $region14: #{tpu_custom_call.1} parent=1 // pred_check
      _
    $region15: #{tpu_custom_call.1} parent=1 // pred_check_branch
      %36 = sbr.rel (0) target = $region17
    $region16: #{tpu_custom_call.1} parent=1 // pred_region
      %37 = dma.done [#allocation4], 128
    $region17: #{tpu_custom_call.1} parent=1 // pred_fallthru
      _
    %38 = vsyncpa [#allocation3], 1
    %39 = vsyncpa [#allocation4], 1

</llo_original>
